<compile_context>
chip_gen: v5e
topology: v5e:2x2
jax: 0.10.0
libtpu: 0.0.40
codegen_flags: <defaults>
</compile_context>

<pallas_src>
import functools

import jax
import jax.numpy as jnp
from jax.experimental import pallas as pl
from jax.experimental.pallas import tpu as pltpu

IN_FEATURES = 32 * 32 * 3        # 3072
HIDDEN = 128
OUT_FEATURES = 10
OUT_PAD = 128                    # lane-dense padded output width
VMEM_LIMIT_BYTES = 48 * 1024 * 1024   # < v7x 64 MiB physical; ample on v5e/v6e


def _round_up(x, m):
    return ((x + m - 1) // m) * m


def _choose_tb(batch, block_b, sub):
    """Batch-tile rows: multiple of the sublane tile, <= block_b, and (when the
    batch spans more than one tile) at least 2 grid steps so v7x's two
    TensorCores both get work."""
    block_b = max(_round_up(block_b, sub), sub)
    if batch <= sub:
        return sub
    if batch <= 2 * block_b:
        half = _round_up((batch + 1) // 2, sub)
        return min(block_b, max(half, sub))
    return block_b


def mlp_kernel(x_ref, w1_ref, b1_ref, w2_ref, b2_ref, o_ref):
    # x_ref:  (TB, 3072)          w1_ref: (3072, 128)   b1_ref: (1, 128)
    # w2_ref: (128, OUT_PAD)      b2_ref: (1, OUT_PAD)  o_ref:  (TB, OUT_PAD)
    x = x_ref[...]
    # fc1 + ReLU (MXU matmul, f32 accumulation regardless of input dtype)
    h = jnp.dot(x, w1_ref[...], preferred_element_type=jnp.float32) + b1_ref[...]
    h = jnp.maximum(h, 0.0)
    # fc2 (f32) into the lane-dense padded output block
    y = jnp.dot(h, w2_ref[...], preferred_element_type=jnp.float32) + b2_ref[...]
    o_ref[...] = y.astype(o_ref.dtype)


def prepare_params(w1, b1, w2, b2, *, compute_dtype=jnp.float32):
    """One-time conversion from PyTorch nn.Linear layout to kernel layout.

    w1: (128, 3072), b1: (128,), w2: (10, 128), b2: (10,)
    Returns (w1_t, b1_2d, w2_t_pad, b2_2d_pad):
      w1_t:      (3072, 128)   in compute_dtype
      b1_2d:     (1, 128)      f32
      w2_t_pad:  (128, 128)    f32, columns 10..127 zero
      b2_2d_pad: (1, 128)      f32, columns 10..127 zero
    """
    w1_t = jnp.transpose(w1).astype(compute_dtype)                  # (3072, 128)
    b1_2d = b1.reshape(1, HIDDEN).astype(jnp.float32)               # (1, 128)
    w2_t = jnp.transpose(w2).astype(jnp.float32)                    # (128, 10)
    w2_t_pad = jnp.zeros((HIDDEN, OUT_PAD), jnp.float32).at[:, :OUT_FEATURES].set(w2_t)
    b2_2d_pad = jnp.zeros((1, OUT_PAD), jnp.float32).at[0, :OUT_FEATURES].set(
        b2.astype(jnp.float32))
    return w1_t, b1_2d, w2_t_pad, b2_2d_pad


@functools.partial(jax.jit, static_argnames=("block_b",))
def mlp_single_forward(x_nchw, params, *, block_b=1024):
    """x_nchw: (B, 3, 32, 32) in f32 or bf16 (bf16 upstream halves HBM traffic).
    params: output of prepare_params().  Returns (B, 10) float32 logits
    (same math as the PyTorch module: flatten -> fc1 -> relu -> fc2)."""
    w1_t, b1_2d, w2_t_pad, b2_2d_pad = params
    B = x_nchw.shape[0]
    # torch.flatten(x, 1); no dtype cast here (would be an extra HBM pass).
    x_flat = x_nchw.reshape(B, IN_FEATURES)

    # Sublane multiple for the activation dtype: 8 (f32) / 16 (bf16) / 32 (int8).
    sub = max(8, 32 // jnp.dtype(x_flat.dtype).itemsize)
    tb = _choose_tb(B, block_b, sub)
    grid = (pl.cdiv(B, tb),)     # partial last block handled by Pallas (masked)

    out = pl.pallas_call(
        mlp_kernel,
        out_shape=jax.ShapeDtypeStruct((B, OUT_PAD), jnp.float32),
        grid_spec=pltpu.PrefetchScalarGridSpec(
            num_scalar_prefetch=0,
            grid=grid,
            in_specs=[
                # Activation tile: streams over the batch grid axis
                # (double-buffered by the Pallas pipeline).
                pl.BlockSpec((tb, IN_FEATURES), lambda i: (i, 0)),
                # Weights / biases: constant index_map -> VMEM resident.
                pl.BlockSpec((IN_FEATURES, HIDDEN), lambda i: (0, 0)),
                pl.BlockSpec((1, HIDDEN), lambda i: (0, 0)),
                pl.BlockSpec((HIDDEN, OUT_PAD), lambda i: (0, 0)),
                pl.BlockSpec((1, OUT_PAD), lambda i: (0, 0)),
            ],
            out_specs=pl.BlockSpec((tb, OUT_PAD), lambda i: (i, 0)),
        ),
        compiler_params=pltpu.CompilerParams(
            # Batch tiles are independent -> megacore-shardable on v7x.
            dimension_semantics=("parallel",),
            # Explicit limit: avoids v5e's 16 MiB scoped default and leaves
            # headroom for the 1024-row f32 tile (~27 MiB double-buffered).
            vmem_limit_bytes=VMEM_LIMIT_BYTES,
        ),
    )(x_flat, w1_t, b1_2d, w2_t_pad, b2_2d_pad)

    # Drop the lane-padding columns (rows already exactly B).
    return out[:, :OUT_FEATURES]


def init_params(key):
    # Deterministic synthetic init matching the PyTorch module's parameter shapes.
    k1, k2, k3, k4 = jax.random.split(key, 4)
    in1, out1 = IN_FEATURES, HIDDEN
    in2, out2 = HIDDEN, OUT_FEATURES
    # Uniform(-1/sqrt(fan_in), 1/sqrt(fan_in)) like nn.Linear default.
    w1 = jax.random.uniform(k1, (out1, in1), jnp.float32,
                            minval=-1.0 / jnp.sqrt(in1), maxval=1.0 / jnp.sqrt(in1))
    b1 = jax.random.uniform(k2, (out1,), jnp.float32,
                            minval=-1.0 / jnp.sqrt(in1), maxval=1.0 / jnp.sqrt(in1))
    w2 = jax.random.uniform(k3, (out2, in2), jnp.float32,
                            minval=-1.0 / jnp.sqrt(in2), maxval=1.0 / jnp.sqrt(in2))
    b2 = jax.random.uniform(k4, (out2,), jnp.float32,
                            minval=-1.0 / jnp.sqrt(in2), maxval=1.0 / jnp.sqrt(in2))
    return w1, b1, w2, b2


if __name__ == "__main__":
    key = jax.random.PRNGKey(0)
    k_x, k_p = jax.random.split(key)

    B = 2
    x = jax.random.normal(k_x, (B, 3, 32, 32), jnp.float32)   # NCHW like PyTorch
    w1, b1, w2, b2 = init_params(k_p)

    # One-time param prep (transpose + lane padding), outside the hot path.
    params_f32 = prepare_params(w1, b1, w2, b2)

    # f32 path, single (partial) block.
    out = jax.block_until_ready(mlp_single_forward(x, params_f32))
    x_flat = x.reshape(B, -1)
    ref = jnp.maximum(x_flat @ w1.T + b1, 0.0) @ w2.T + b2
    assert out.shape == (B, OUT_FEATURES)
    assert jnp.allclose(out, ref, atol=1e-4, rtol=1e-4)

    # f32 path, multi-step grid with a partial last block (B=10, tb=8 -> grid=(2,)).
    B2 = 10
    x2 = jax.random.normal(k_x, (B2, 3, 32, 32), jnp.float32)
    out2 = jax.block_until_ready(mlp_single_forward(x2, params_f32, block_b=8))
    ref2 = jnp.maximum(x2.reshape(B2, -1) @ w1.T + b1, 0.0) @ w2.T + b2
    assert out2.shape == (B2, OUT_FEATURES)
    assert jnp.allclose(out2, ref2, atol=1e-4, rtol=1e-4)

    # bf16 path: activations arrive in bf16 from the producer (no wrapper cast),
    # f32 MXU accumulation; checked against the f32 reference with loose tol.
    params_bf16 = prepare_params(w1, b1, w2, b2, compute_dtype=jnp.bfloat16)
    out_bf16 = jax.block_until_ready(
        mlp_single_forward(x.astype(jnp.bfloat16), params_bf16))
    assert out_bf16.shape == (B, OUT_FEATURES)
    assert jnp.allclose(out_bf16, ref, atol=5e-2, rtol=5e-2)

    print("KERNEL_OK")
</pallas_src>

<mosaic_0001>
module attributes {stable_mosaic.version = 11 : i64} {
  func.func @mlp_kernel(%arg0: i32, %arg1: memref<8x3072xf32, #tpu.memory_space<vmem>>, %arg2: memref<3072x128xf32, #tpu.memory_space<vmem>>, %arg3: memref<1x128xf32, #tpu.memory_space<vmem>>, %arg4: memref<128x128xf32, #tpu.memory_space<vmem>>, %arg5: memref<1x128xf32, #tpu.memory_space<vmem>>, %arg6: memref<8x128xf32, #tpu.memory_space<vmem>>) attributes {dimension_semantics = [#tpu.dimension_semantics<parallel>], iteration_bounds = array<i64: 1>, scalar_prefetch = 0 : i64, scratch_operands = 0 : i64, tpu.core_type = #tpu.core_type<tc>, window_params = [{transform_indices = @transform_0, window_bounds = array<i64: 8, 3072>}, {pipeline_mode = #tpu.pipeline_mode<synchronous>, transform_indices = @transform_1, window_bounds = array<i64: 3072, 128>}, {pipeline_mode = #tpu.pipeline_mode<synchronous>, transform_indices = @transform_2, window_bounds = array<i64: 1, 128>}, {pipeline_mode = #tpu.pipeline_mode<synchronous>, transform_indices = @transform_3, window_bounds = array<i64: 128, 128>}, {pipeline_mode = #tpu.pipeline_mode<synchronous>, transform_indices = @transform_4, window_bounds = array<i64: 1, 128>}, {transform_indices = @transform_5, window_bounds = array<i64: 8, 128>}]} {
    %c0 = arith.constant 0 : index
    %c0_0 = arith.constant 0 : index
    %0 = vector.load %arg1[%c0, %c0_0] : memref<8x3072xf32, #tpu.memory_space<vmem>>, vector<8x3072xf32>
    %c0_1 = arith.constant 0 : index
    %c0_2 = arith.constant 0 : index
    %1 = vector.load %arg2[%c0_1, %c0_2] : memref<3072x128xf32, #tpu.memory_space<vmem>>, vector<3072x128xf32>
    %cst = arith.constant dense<0.000000e+00> : vector<8x128xf32>
    %2 = tpu.matmul %0, %1, %cst {dimension_numbers = #tpu.dot_dimension_numbers<[1], [0], [0], [1], [0, 0, 1, 1], [], []>} : vector<8x3072xf32>, vector<3072x128xf32>, vector<8x128xf32> -> vector<8x128xf32>
    %c0_3 = arith.constant 0 : index
    %c0_4 = arith.constant 0 : index
    %3 = vector.load %arg3[%c0_3, %c0_4] : memref<1x128xf32, #tpu.memory_space<vmem>>, vector<1x128xf32>
    %4 = vector.broadcast %3 : vector<1x128xf32> to vector<8x128xf32>
    %5 = arith.addf %2, %4 : vector<8x128xf32>
    %cst_5 = arith.constant 0.000000e+00 : f32
    %6 = vector.broadcast %cst_5 : f32 to vector<8x128xf32>
    %7 = arith.maximumf %5, %6 : vector<8x128xf32>
    %c0_6 = arith.constant 0 : index
    %c0_7 = arith.constant 0 : index
    %8 = vector.load %arg4[%c0_6, %c0_7] : memref<128x128xf32, #tpu.memory_space<vmem>>, vector<128x128xf32>
    %cst_8 = arith.constant dense<0.000000e+00> : vector<8x128xf32>
    %9 = tpu.matmul %7, %8, %cst_8 {dimension_numbers = #tpu.dot_dimension_numbers<[1], [0], [0], [1], [0, 0, 1, 1], [], []>} : vector<8x128xf32>, vector<128x128xf32>, vector<8x128xf32> -> vector<8x128xf32>
    %c0_9 = arith.constant 0 : index
    %c0_10 = arith.constant 0 : index
    %10 = vector.load %arg5[%c0_9, %c0_10] : memref<1x128xf32, #tpu.memory_space<vmem>>, vector<1x128xf32>
    %11 = vector.broadcast %10 : vector<1x128xf32> to vector<8x128xf32>
    %12 = arith.addf %9, %11 : vector<8x128xf32>
    %c0_11 = arith.constant 0 : index
    %c0_12 = arith.constant 0 : index
    %13 = vector.load %arg6[%c0_11, %c0_12] : memref<8x128xf32, #tpu.memory_space<vmem>>, vector<8x128xf32>
    tpu.vector_store %arg6[%c0_11, %c0_12], %12 {strides = array<i32>} : memref<8x128xf32, #tpu.memory_space<vmem>>, vector<8x128xf32>,
    return
  }
  func.func @transform_0(%arg0: i32) -> (i32, i32) {
    %c0_i32 = arith.constant 0 : i32
    %c0_i32_0 = arith.constant 0 : i32
    return %arg0, %c0_i32 : i32, i32
  }
  func.func @transform_1(%arg0: i32) -> (i32, i32) {
    %c0_i32 = arith.constant 0 : i32
    %c0_i32_0 = arith.constant 0 : i32
    %c0_i32_1 = arith.constant 0 : i32
    return %c0_i32, %c0_i32_0 : i32, i32
  }
  func.func @transform_2(%arg0: i32) -> (i32, i32) {
    %c0_i32 = arith.constant 0 : i32
    %c0_i32_0 = arith.constant 0 : i32
    %c0_i32_1 = arith.constant 0 : i32
    return %c0_i32, %c0_i32_0 : i32, i32
  }
  func.func @transform_3(%arg0: i32) -> (i32, i32) {
    %c0_i32 = arith.constant 0 : i32
    %c0_i32_0 = arith.constant 0 : i32
    %c0_i32_1 = arith.constant 0 : i32
    return %c0_i32, %c0_i32_0 : i32, i32
  }
  func.func @transform_4(%arg0: i32) -> (i32, i32) {
    %c0_i32 = arith.constant 0 : i32
    %c0_i32_0 = arith.constant 0 : i32
    %c0_i32_1 = arith.constant 0 : i32
    return %c0_i32, %c0_i32_0 : i32, i32
  }
  func.func @transform_5(%arg0: i32) -> (i32, i32) {
    %c0_i32 = arith.constant 0 : i32
    %c0_i32_0 = arith.constant 0 : i32
    return %arg0, %c0_i32 : i32, i32
  }
}

</mosaic_0001>

<llo_original>
// kernel: mlp_single_forward.1
$region0: #{mlp_single_forward.1}
  #allocation0 [shape = 'u32[]', space=smem, size = 0x4, offset = 0x4, fixed_abs, tag = 'smem constant byte address 0x4 - core index']
  #allocation1 [shape = 'u32[72,128]{1,0:T(1,128)}', space=vmem, size = 0x9000, scoped, tag = 'internal scratch']
  %s0 = inlined_call_operand.vmem [shape: f32[2,3072], index: 0, kind: input, shape index: {}]
  %s1 = inlined_call_operand.hbm [shape: f32[3072,128], index: 1, kind: input, shape index: {}]
  %s2 = inlined_call_operand.hbm [shape: f32[1,128], index: 2, kind: input, shape index: {}]
  %s3 = inlined_call_operand.hbm [shape: f32[128,128], index: 3, kind: input, shape index: {}]
  %s4 = inlined_call_operand.hbm [shape: f32[1,128], index: 4, kind: input, shape index: {}]
  %s5 = inlined_call_operand.hbm [shape: f32[2,128], index: 5, kind: output, shape index: {}]
  %s6 = sld [smem:[#allocation0]]
  $region46: #{mlp_single_forward.1} parent=0
    _
  %s8 = ssub.s32 1, %s6
  %s9 = scalar_select 0, %s8, %s6
  $region1: #{mlp_single_forward.1} parent=0
    #allocation2 [shape = 'u8[1572864]{0}', space=vmem, size = 0x180000, scoped, tag = 'input window, operand 1, single buffered']
    #allocation3 [shape = 's32[1]{0}', space=sflag, size = 0x4, scoped, tag = 'scoped memory for mlp_single_forward.1']
    #allocation4 [shape = 's32[1]{0}', space=sflag, size = 0x4, scoped, tag = 'scoped memory for mlp_single_forward.1']
    #allocation5 [shape = 'u8[512]{0}', space=vmem, size = 0x400, scoped, tag = 'input window, operand 2, single buffered']
    #allocation6 [shape = 's32[1]{0}', space=sflag, size = 0x4, scoped, tag = 'scoped memory for mlp_single_forward.1']
    #allocation7 [shape = 'u8[65536]{0}', space=vmem, size = 0x10000, scoped, tag = 'input window, operand 3, single buffered']
    #allocation8 [shape = 'u8[512]{0}', space=vmem, size = 0x400, scoped, tag = 'input window, operand 4, single buffered']
    #allocation9 [shape = 's32[1]{0}', space=sflag, size = 0x4, scoped, tag = 'scoped memory for mlp_single_forward.1']
    #allocation10 [shape = 'u8[4096]{0}', space=vmem, size = 0x1000, scoped, tag = 'output window, operand 0, single buffered']
    %10 = vsyncpa [#allocation3], 0
    %11 = vsyncpa [#allocation6], 0
    %12 = vsyncpa [#allocation9], 0
    %13 = vsyncpa [#allocation4], 0
    // Predicated region
    $region2: #{mlp_single_forward.1} parent=1 // pred_check
      _
    $region3: #{mlp_single_forward.1} parent=1 // pred_check_branch
      %15 = sbr.rel (0) target = $region5
    $region4: #{mlp_single_forward.1} parent=1 // pred_region
      _
    $region5: #{mlp_single_forward.1} parent=1 // pred_fallthru
      _
    // Predicated region
    $region6: #{mlp_single_forward.1} parent=1 // pred_check
      _
    $region7: #{mlp_single_forward.1} parent=1 // pred_check_branch
      %17 = sbr.rel (0) target = $region9
    $region8: #{mlp_single_forward.1} parent=1 // pred_region
      %19 = vsyncadd [#allocation3], 0
      %s20 = sshll.u32 %s1, 4
      %s21 = int_to_ptr.hbm [resolvable:$true] %s20
      %s22 = sshll.u32 [#allocation2], 4
      %s23 = int_to_ptr.vmem [resolvable:$true] %s22
      %28 = dma.hbm_to_vmem [thread:$0]  %s21, 49152, %s23, [#allocation3], 128, 128, 8
    $region9: #{mlp_single_forward.1} parent=1 // pred_fallthru
      _
    // Predicated region
    $region10: #{mlp_single_forward.1} parent=1 // pred_check
      _
    $region11: #{mlp_single_forward.1} parent=1 // pred_check_branch
      %30 = sbr.rel (0) target = $region13
    $region12: #{mlp_single_forward.1} parent=1 // pred_region
      %32 = vsyncadd [#allocation6], 0
      %s34 = sshll.u32 %s2, 4
      %s35 = int_to_ptr.hbm [resolvable:$true] %s34
      %s36 = sshll.u32 [#allocation5], 4
      %s37 = int_to_ptr.vmem [resolvable:$true] %s36
      %39 = dma.hbm_to_vmem [thread:$0]  %s35, 16, %s37, [#allocation6]
    $region13: #{mlp_single_forward.1} parent=1 // pred_fallthru
      _
    // Predicated region
    $region14: #{mlp_single_forward.1} parent=1 // pred_check
      _
    $region15: #{mlp_single_forward.1} parent=1 // pred_check_branch
      %41 = sbr.rel (0) target = $region17
    $region16: #{mlp_single_forward.1} parent=1 // pred_region
      %43 = vsyncadd [#allocation6], 0
      %s44 = sshll.u32 %s3, 4
      %s45 = int_to_ptr.hbm [resolvable:$true] %s44
      %s46 = sshll.u32 [#allocation7], 4
      %s47 = int_to_ptr.vmem [resolvable:$true] %s46
      %52 = dma.hbm_to_vmem [thread:$0]  %s45, 2048, %s47, [#allocation6], 128, 128, 8
    $region17: #{mlp_single_forward.1} parent=1 // pred_fallthru
      _
    // Predicated region
    $region18: #{mlp_single_forward.1} parent=1 // pred_check
      _
    $region19: #{mlp_single_forward.1} parent=1 // pred_check_branch
      %54 = sbr.rel (0) target = $region21
    $region20: #{mlp_single_forward.1} parent=1 // pred_region
      %56 = vsyncadd [#allocation9], 0
      %s58 = sshll.u32 %s4, 4
      %s59 = int_to_ptr.hbm [resolvable:$true] %s58
      %s60 = sshll.u32 [#allocation8], 4
      %s61 = int_to_ptr.vmem [resolvable:$true] %s60
      %63 = dma.hbm_to_vmem [thread:$0]  %s59, 16, %s61, [#allocation9]
    $region21: #{mlp_single_forward.1} parent=1 // pred_fallthru
      _
    // Predicated region
    $region22: #{mlp_single_forward.1} parent=1 // pred_check
      _
    $region23: #{mlp_single_forward.1} parent=1 // pred_check_branch
      %65 = sbr.rel (0) target = $region25
    $region24: #{mlp_single_forward.1} parent=1 // pred_region
      %67 = dma.done [#allocation3], 49152
    $region25: #{mlp_single_forward.1} parent=1 // pred_fallthru
      _
    // Predicated region
    $region26: #{mlp_single_forward.1} parent=1 // pred_check
      _
    $region27: #{mlp_single_forward.1} parent=1 // pred_check_branch
      %69 = sbr.rel (0) target = $region29
    $region28: #{mlp_single_forward.1} parent=1 // pred_region
      %71 = dma.done [#allocation6], 16
    $region29: #{mlp_single_forward.1} parent=1 // pred_fallthru
      _
    // Predicated region
    $region30: #{mlp_single_forward.1} parent=1 // pred_check
      _
    $region31: #{mlp_single_forward.1} parent=1 // pred_check_branch
      %73 = sbr.rel (0) target = $region33
    $region32: #{mlp_single_forward.1} parent=1 // pred_region
      %75 = dma.done [#allocation6], 2048
    $region33: #{mlp_single_forward.1} parent=1 // pred_fallthru
      _
    // Predicated region
    $region34: #{mlp_single_forward.1} parent=1 // pred_check
      _
    $region35: #{mlp_single_forward.1} parent=1 // pred_check_branch
      %77 = sbr.rel (0) target = $region37
    $region36: #{mlp_single_forward.1} parent=1 // pred_region
      %79 = dma.done [#allocation9], 16
    $region37: #{mlp_single_forward.1} parent=1 // pred_fallthru
      _
    %v80 = vld [vmem:[%s0] sm:$0xff]
    %v81 = vld [vmem:[%s0 + $0x8] sm:$0xff]
    %v82 = vld [vmem:[%s0 + $0x10] sm:$0xff]
    %v83 = vld [vmem:[%s0 + $0x18] sm:$0xff]
    %v84 = vld [vmem:[%s0 + $0x20] sm:$0xff]
    %v85 = vld [vmem:[%s0 + $0x28] sm:$0xff]
    %v86 = vld [vmem:[%s0 + $0x30] sm:$0xff]
    %v87 = vld [vmem:[%s0 + $0x38] sm:$0xff]
    %v88 = vld [vmem:[%s0 + $0x40] sm:$0xff]
    %v89 = vld [vmem:[%s0 + $0x48] sm:$0xff]
    %v90 = vld [vmem:[%s0 + $0x50] sm:$0xff]
    %v91 = vld [vmem:[%s0 + $0x58] sm:$0xff]
    %v92 = vld [vmem:[%s0 + $0x60] sm:$0xff]
    %v93 = vld [vmem:[%s0 + $0x68] sm:$0xff]
    %v94 = vld [vmem:[%s0 + $0x70] sm:$0xff]
    %v95 = vld [vmem:[%s0 + $0x78] sm:$0xff]
    %v96 = vld [vmem:[%s0 + $0x80] sm:$0xff]
    %v97 = vld [vmem:[%s0 + $0x88] sm:$0xff]
    %v98 = vld [vmem:[%s0 + $0x90] sm:$0xff]
    %v99 = vld [vmem:[%s0 + $0x98] sm:$0xff]
    %v100 = vld [vmem:[%s0 + $0xa0] sm:$0xff]
    %v101 = vld [vmem:[%s0 + $0xa8] sm:$0xff]
    %v102 = vld [vmem:[%s0 + $0xb0] sm:$0xff]
    %v103 = vld [vmem:[%s0 + $0xb8] sm:$0xff]
    %v104 = vld [vmem:[#allocation2] sm:$0xff]
    %v105 = vld [vmem:[#allocation2 + $0x8] sm:$0xff]
    %v106 = vld [vmem:[#allocation2 + $0x10] sm:$0xff]
    %v107 = vld [vmem:[#allocation2 + $0x18] sm:$0xff]
    %v108 = vld [vmem:[#allocation2 + $0x20] sm:$0xff]
    %v109 = vld [vmem:[#allocation2 + $0x28] sm:$0xff]
    %v110 = vld [vmem:[#allocation2 + $0x30] sm:$0xff]
    %v111 = vld [vmem:[#allocation2 + $0x38] sm:$0xff]
    %v112 = vld [vmem:[#allocation2 + $0x40] sm:$0xff]
    %v113 = vld [vmem:[#allocation2 + $0x48] sm:$0xff]
    %v114 = vld [vmem:[#allocation2 + $0x50] sm:$0xff]
    %v115 = vld [vmem:[#allocation2 + $0x58] sm:$0xff]
    %v116 = vld [vmem:[#allocation2 + $0x60] sm:$0xff]
    %v117 = vld [vmem:[#allocation2 + $0x68] sm:$0xff]
    %v118 = vld [vmem:[#allocation2 + $0x70] sm:$0xff]
    %v119 = vld [vmem:[#allocation2 + $0x78] sm:$0xff]
    %v120 = vld [vmem:[#allocation2 + $0x80] sm:$0xff]
    %v121 = vld [vmem:[#allocation2 + $0x88] sm:$0xff]
    %v122 = vld [vmem:[#allocation2 + $0x90] sm:$0xff]
    %v123 = vld [vmem:[#allocation2 + $0x98] sm:$0xff]
    %v124 = vld [vmem:[#allocation2 + $0xa0] sm:$0xff]
    %v125 = vld [vmem:[#allocation2 + $0xa8] sm:$0xff]
    %v126 = vld [vmem:[#allocation2 + $0xb0] sm:$0xff]
    %v127 = vld [vmem:[#allocation2 + $0xb8] sm:$0xff]
    %v128 = vld [vmem:[#allocation2 + $0xc0] sm:$0xff]
    %v129 = vld [vmem:[#allocation2 + $0xc8] sm:$0xff]
    %v130 = vld [vmem:[#allocation2 + $0xd0] sm:$0xff]
    %v131 = vld [vmem:[#allocation2 + $0xd8] sm:$0xff]
    %v132 = vld [vmem:[#allocation2 + $0xe0] sm:$0xff]
    %v133 = vld [vmem:[#allocation2 + $0xe8] sm:$0xff]
    %v134 = vld [vmem:[#allocation2 + $0xf0] sm:$0xff]
    %v135 = vld [vmem:[#allocation2 + $0xf8] sm:$0xff]
    %v136 = vld [vmem:[#allocation2 + $0x100] sm:$0xff]
    %v137 = vld [vmem:[#allocation2 + $0x108] sm:$0xff]
    %v138 = vld [vmem:[#allocation2 + $0x110] sm:$0xff]
    %v139 = vld [vmem:[#allocation2 + $0x118] sm:$0xff]
    %v140 = vld [vmem:[#allocation2 + $0x120] sm:$0xff]
    %v141 = vld [vmem:[#allocation2 + $0x128] sm:$0xff]
    %v142 = vld [vmem:[#allocation2 + $0x130] sm:$0xff]
    %v143 = vld [vmem:[#allocation2 + $0x138] sm:$0xff]
    %v144 = vld [vmem:[#allocation2 + $0x140] sm:$0xff]
    %v145 = vld [vmem:[#allocation2 + $0x148] sm:$0xff]
    %v146 = vld [vmem:[#allocation2 + $0x150] sm:$0xff]
    %v147 = vld [vmem:[#allocation2 + $0x158] sm:$0xff]
    %v148 = vld [vmem:[#allocation2 + $0x160] sm:$0xff]
    %v149 = vld [vmem:[#allocation2 + $0x168] sm:$0xff]
    %v150 = vld [vmem:[#allocation2 + $0x170] sm:$0xff]
    %v151 = vld [vmem:[#allocation2 + $0x178] sm:$0xff]
    %v152 = vld [vmem:[#allocation2 + $0x180] sm:$0xff]
    %v153 = vld [vmem:[#allocation2 + $0x188] sm:$0xff]
    %v154 = vld [vmem:[#allocation2 + $0x190] sm:$0xff]
    %v155 = vld [vmem:[#allocation2 + $0x198] sm:$0xff]
    %v156 = vld [vmem:[#allocation2 + $0x1a0] sm:$0xff]
    %v157 = vld [vmem:[#allocation2 + $0x1a8] sm:$0xff]
    %v158 = vld [vmem:[#allocation2 + $0x1b0] sm:$0xff]
    %v159 = vld [vmem:[#allocation2 + $0x1b8] sm:$0xff]
    %v160 = vld [vmem:[#allocation2 + $0x1c0] sm:$0xff]
    %v161 = vld [vmem:[#allocation2 + $0x1c8] sm:$0xff]
    %v162 = vld [vmem:[#allocation2 + $0x1d0] sm:$0xff]
    %v163 = vld [vmem:[#allocation2 + $0x1d8] sm:$0xff]
    %v164 = vld [vmem:[#allocation2 + $0x1e0] sm:$0xff]
    %v165 = vld [vmem:[#allocation2 + $0x1e8] sm:$0xff]
    %v166 = vld [vmem:[#allocation2 + $0x1f0] sm:$0xff]
    %v167 = vld [vmem:[#allocation2 + $0x1f8] sm:$0xff]
    %v168 = vld [vmem:[#allocation2 + $0x200] sm:$0xff]
    %v169 = vld [vmem:[#allocation2 + $0x208] sm:$0xff]
    %v170 = vld [vmem:[#allocation2 + $0x210] sm:$0xff]
    %v171 = vld [vmem:[#allocation2 + $0x218] sm:$0xff]
    %v172 = vld [vmem:[#allocation2 + $0x220] sm:$0xff]
    %v173 = vld [vmem:[#allocation2 + $0x228] sm:$0xff]
    %v174 = vld [vmem:[#allocation2 + $0x230] sm:$0xff]
    %v175 = vld [vmem:[#allocation2 + $0x238] sm:$0xff]
    %v176 = vld [vmem:[#allocation2 + $0x240] sm:$0xff]
    %v177 = vld [vmem:[#allocation2 + $0x248] sm:$0xff]
    %v178 = vld [vmem:[#allocation2 + $0x250] sm:$0xff]
    %v179 = vld [vmem:[#allocation2 + $0x258] sm:$0xff]
    %v180 = vld [vmem:[#allocation2 + $0x260] sm:$0xff]
    %v181 = vld [vmem:[#allocation2 + $0x268] sm:$0xff]
    %v182 = vld [vmem:[#allocation2 + $0x270] sm:$0xff]
    %v183 = vld [vmem:[#allocation2 + $0x278] sm:$0xff]
    %v184 = vld [vmem:[#allocation2 + $0x280] sm:$0xff]
    %v185 = vld [vmem:[#allocation2 + $0x288] sm:$0xff]
    %v186 = vld [vmem:[#allocation2 + $0x290] sm:$0xff]
    %v187 = vld [vmem:[#allocation2 + $0x298] sm:$0xff]
    %v188 = vld [vmem:[#allocation2 + $0x2a0] sm:$0xff]
    %v189 = vld [vmem:[#allocation2 + $0x2a8] sm:$0xff]
    %v190 = vld [vmem:[#allocation2 + $0x2b0] sm:$0xff]
    %v191 = vld [vmem:[#allocation2 + $0x2b8] sm:$0xff]
    %v192 = vld [vmem:[#allocation2 + $0x2c0] sm:$0xff]
    %v193 = vld [vmem:[#allocation2 + $0x2c8] sm:$0xff]
    %v194 = vld [vmem:[#allocation2 + $0x2d0] sm:$0xff]
    %v195 = vld [vmem:[#allocation2 + $0x2d8] sm:$0xff]
    %v196 = vld [vmem:[#allocation2 + $0x2e0] sm:$0xff]
    %v197 = vld [vmem:[#allocation2 + $0x2e8] sm:$0xff]
    %v198 = vld [vmem:[#allocation2 + $0x2f0] sm:$0xff]
    %v199 = vld [vmem:[#allocation2 + $0x2f8] sm:$0xff]
    %v200 = vld [vmem:[#allocation2 + $0x300] sm:$0xff]
    %v201 = vld [vmem:[#allocation2 + $0x308] sm:$0xff]
    %v202 = vld [vmem:[#allocation2 + $0x310] sm:$0xff]
    %v203 = vld [vmem:[#allocation2 + $0x318] sm:$0xff]
    %v204 = vld [vmem:[#allocation2 + $0x320] sm:$0xff]
    %v205 = vld [vmem:[#allocation2 + $0x328] sm:$0xff]
    %v206 = vld [vmem:[#allocation2 + $0x330] sm:$0xff]
    %v207 = vld [vmem:[#allocation2 + $0x338] sm:$0xff]
    %v208 = vld [vmem:[#allocation2 + $0x340] sm:$0xff]
    %v209 = vld [vmem:[#allocation2 + $0x348] sm:$0xff]
    %v210 = vld [vmem:[#allocation2 + $0x350] sm:$0xff]
    %v211 = vld [vmem:[#allocation2 + $0x358] sm:$0xff]
    %v212 = vld [vmem:[#allocation2 + $0x360] sm:$0xff]
    %v213 = vld [vmem:[#allocation2 + $0x368] sm:$0xff]
    %v214 = vld [vmem:[#allocation2 + $0x370] sm:$0xff]
    %v215 = vld [vmem:[#allocation2 + $0x378] sm:$0xff]
    %v216 = vld [vmem:[#allocation2 + $0x380] sm:$0xff]
    %v217 = vld [vmem:[#allocation2 + $0x388] sm:$0xff]
    %v218 = vld [vmem:[#allocation2 + $0x390] sm:$0xff]
    %v219 = vld [vmem:[#allocation2 + $0x398] sm:$0xff]
    %v220 = vld [vmem:[#allocation2 + $0x3a0] sm:$0xff]
    %v221 = vld [vmem:[#allocation2 + $0x3a8] sm:$0xff]
    %v222 = vld [vmem:[#allocation2 + $0x3b0] sm:$0xff]
    %v223 = vld [vmem:[#allocation2 + $0x3b8] sm:$0xff]
    %v224 = vld [vmem:[#allocation2 + $0x3c0] sm:$0xff]
    %v225 = vld [vmem:[#allocation2 + $0x3c8] sm:$0xff]
    %v226 = vld [vmem:[#allocation2 + $0x3d0] sm:$0xff]
    %v227 = vld [vmem:[#allocation2 + $0x3d8] sm:$0xff]
    %v228 = vld [vmem:[#allocation2 + $0x3e0] sm:$0xff]
    %v229 = vld [vmem:[#allocation2 + $0x3e8] sm:$0xff]
    %v230 = vld [vmem:[#allocation2 + $0x3f0] sm:$0xff]
    %v231 = vld [vmem:[#allocation2 + $0x3f8] sm:$0xff]
    %v232 = vld [vmem:[#allocation2 + $0x400] sm:$0xff]
    %v233 = vld [vmem:[#allocation2 + $0x408] sm:$0xff]
    %v234 = vld [vmem:[#allocation2 + $0x410] sm:$0xff]
    %v235 = vld [vmem:[#allocation2 + $0x418] sm:$0xff]
    %v236 = vld [vmem:[#allocation2 + $0x420] sm:$0xff]
    %v237 = vld [vmem:[#allocation2 + $0x428] sm:$0xff]
    %v238 = vld [vmem:[#allocation2 + $0x430] sm:$0xff]
    %v239 = vld [vmem:[#allocation2 + $0x438] sm:$0xff]
    %v240 = vld [vmem:[#allocation2 + $0x440] sm:$0xff]
    %v241 = vld [vmem:[#allocation2 + $0x448] sm:$0xff]
    %v242 = vld [vmem:[#allocation2 + $0x450] sm:$0xff]
    %v243 = vld [vmem:[#allocation2 + $0x458] sm:$0xff]
    %v244 = vld [vmem:[#allocation2 + $0x460] sm:$0xff]
    %v245 = vld [vmem:[#allocation2 + $0x468] sm:$0xff]
    %v246 = vld [vmem:[#allocation2 + $0x470] sm:$0xff]
    %v247 = vld [vmem:[#allocation2 + $0x478] sm:$0xff]
    %v248 = vld [vmem:[#allocation2 + $0x480] sm:$0xff]
    %v249 = vld [vmem:[#allocation2 + $0x488] sm:$0xff]
    %v250 = vld [vmem:[#allocation2 + $0x490] sm:$0xff]
    %v251 = vld [vmem:[#allocation2 + $0x498] sm:$0xff]
    %v252 = vld [vmem:[#allocation2 + $0x4a0] sm:$0xff]
    %v253 = vld [vmem:[#allocation2 + $0x4a8] sm:$0xff]
    %v254 = vld [vmem:[#allocation2 + $0x4b0] sm:$0xff]
    %v255 = vld [vmem:[#allocation2 + $0x4b8] sm:$0xff]
    %v256 = vld [vmem:[#allocation2 + $0x4c0] sm:$0xff]
    %v257 = vld [vmem:[#allocation2 + $0x4c8] sm:$0xff]
    %v258 = vld [vmem:[#allocation2 + $0x4d0] sm:$0xff]
    %v259 = vld [vmem:[#allocation2 + $0x4d8] sm:$0xff]
    %v260 = vld [vmem:[#allocation2 + $0x4e0] sm:$0xff]
    %v261 = vld [vmem:[#allocation2 + $0x4e8] sm:$0xff]
    %v262 = vld [vmem:[#allocation2 + $0x4f0] sm:$0xff]
    %v263 = vld [vmem:[#allocation2 + $0x4f8] sm:$0xff]
    %v264 = vld [vmem:[#allocation2 + $0x500] sm:$0xff]
    %v265 = vld [vmem:[#allocation2 + $0x508] sm:$0xff]
    %v266 = vld [vmem:[#allocation2 + $0x510] sm:$0xff]
    %v267 = vld [vmem:[#allocation2 + $0x518] sm:$0xff]
    %v268 = vld [vmem:[#allocation2 + $0x520] sm:$0xff]
    %v269 = vld [vmem:[#allocation2 + $0x528] sm:$0xff]
    %v270 = vld [vmem:[#allocation2 + $0x530] sm:$0xff]
    %v271 = vld [vmem:[#allocation2 + $0x538] sm:$0xff]
    %v272 = vld [vmem:[#allocation2 + $0x540] sm:$0xff]
    %v273 = vld [vmem:[#allocation2 + $0x548] sm:$0xff]
    %v274 = vld [vmem:[#allocation2 + $0x550] sm:$0xff]
    %v275 = vld [vmem:[#allocation2 + $0x558] sm:$0xff]
    %v276 = vld [vmem:[#allocation2 + $0x560] sm:$0xff]
    %v277 = vld [vmem:[#allocation2 + $0x568] sm:$0xff]
    %v278 = vld [vmem:[#allocation2 + $0x570] sm:$0xff]
    %v279 = vld [vmem:[#allocation2 + $0x578] sm:$0xff]
    %v280 = vld [vmem:[#allocation2 + $0x580] sm:$0xff]
    %v281 = vld [vmem:[#allocation2 + $0x588] sm:$0xff]
    %v282 = vld [vmem:[#allocation2 + $0x590] sm:$0xff]
    %v283 = vld [vmem:[#allocation2 + $0x598] sm:$0xff]
    %v284 = vld [vmem:[#allocation2 + $0x5a0] sm:$0xff]
    %v285 = vld [vmem:[#allocation2 + $0x5a8] sm:$0xff]
    %v286 = vld [vmem:[#allocation2 + $0x5b0] sm:$0xff]
    %v287 = vld [vmem:[#allocation2 + $0x5b8] sm:$0xff]
    %v288 = vld [vmem:[#allocation2 + $0x5c0] sm:$0xff]
    %v289 = vld [vmem:[#allocation2 + $0x5c8] sm:$0xff]
    %v290 = vld [vmem:[#allocation2 + $0x5d0] sm:$0xff]
    %v291 = vld [vmem:[#allocation2 + $0x5d8] sm:$0xff]
    %v292 = vld [vmem:[#allocation2 + $0x5e0] sm:$0xff]
    %v293 = vld [vmem:[#allocation2 + $0x5e8] sm:$0xff]
    %v294 = vld [vmem:[#allocation2 + $0x5f0] sm:$0xff]
    %v295 = vld [vmem:[#allocation2 + $0x5f8] sm:$0xff]
    %v296 = vld [vmem:[#allocation2 + $0x600] sm:$0xff]
    %v297 = vld [vmem:[#allocation2 + $0x608] sm:$0xff]
    %v298 = vld [vmem:[#allocation2 + $0x610] sm:$0xff]
    %v299 = vld [vmem:[#allocation2 + $0x618] sm:$0xff]
    %v300 = vld [vmem:[#allocation2 + $0x620] sm:$0xff]
    %v301 = vld [vmem:[#allocation2 + $0x628] sm:$0xff]
    %v302 = vld [vmem:[#allocation2 + $0x630] sm:$0xff]
    %v303 = vld [vmem:[#allocation2 + $0x638] sm:$0xff]
    %v304 = vld [vmem:[#allocation2 + $0x640] sm:$0xff]
    %v305 = vld [vmem:[#allocation2 + $0x648] sm:$0xff]
    %v306 = vld [vmem:[#allocation2 + $0x650] sm:$0xff]
    %v307 = vld [vmem:[#allocation2 + $0x658] sm:$0xff]
    %v308 = vld [vmem:[#allocation2 + $0x660] sm:$0xff]
    %v309 = vld [vmem:[#allocation2 + $0x668] sm:$0xff]
    %v310 = vld [vmem:[#allocation2 + $0x670] sm:$0xff]
    %v311 = vld [vmem:[#allocation2 + $0x678] sm:$0xff]
    %v312 = vld [vmem:[#allocation2 + $0x680] sm:$0xff]
    %v313 = vld [vmem:[#allocation2 + $0x688] sm:$0xff]
    %v314 = vld [vmem:[#allocation2 + $0x690] sm:$0xff]
    %v315 = vld [vmem:[#allocation2 + $0x698] sm:$0xff]
    %v316 = vld [vmem:[#allocation2 + $0x6a0] sm:$0xff]
    %v317 = vld [vmem:[#allocation2 + $0x6a8] sm:$0xff]
    %v318 = vld [vmem:[#allocation2 + $0x6b0] sm:$0xff]
    %v319 = vld [vmem:[#allocation2 + $0x6b8] sm:$0xff]
    %v320 = vld [vmem:[#allocation2 + $0x6c0] sm:$0xff]
    %v321 = vld [vmem:[#allocation2 + $0x6c8] sm:$0xff]
    %v322 = vld [vmem:[#allocation2 + $0x6d0] sm:$0xff]
    %v323 = vld [vmem:[#allocation2 + $0x6d8] sm:$0xff]
    %v324 = vld [vmem:[#allocation2 + $0x6e0] sm:$0xff]
    %v325 = vld [vmem:[#allocation2 + $0x6e8] sm:$0xff]
    %v326 = vld [vmem:[#allocation2 + $0x6f0] sm:$0xff]
    %v327 = vld [vmem:[#allocation2 + $0x6f8] sm:$0xff]
    %v328 = vld [vmem:[#allocation2 + $0x700] sm:$0xff]
    %v329 = vld [vmem:[#allocation2 + $0x708] sm:$0xff]
    %v330 = vld [vmem:[#allocation2 + $0x710] sm:$0xff]
    %v331 = vld [vmem:[#allocation2 + $0x718] sm:$0xff]
    %v332 = vld [vmem:[#allocation2 + $0x720] sm:$0xff]
    %v333 = vld [vmem:[#allocation2 + $0x728] sm:$0xff]
    %v334 = vld [vmem:[#allocation2 + $0x730] sm:$0xff]
    %v335 = vld [vmem:[#allocation2 + $0x738] sm:$0xff]
    %v336 = vld [vmem:[#allocation2 + $0x740] sm:$0xff]
    %v337 = vld [vmem:[#allocation2 + $0x748] sm:$0xff]
    %v338 = vld [vmem:[#allocation2 + $0x750] sm:$0xff]
    %v339 = vld [vmem:[#allocation2 + $0x758] sm:$0xff]
    %v340 = vld [vmem:[#allocation2 + $0x760] sm:$0xff]
    %v341 = vld [vmem:[#allocation2 + $0x768] sm:$0xff]
    %v342 = vld [vmem:[#allocation2 + $0x770] sm:$0xff]
    %v343 = vld [vmem:[#allocation2 + $0x778] sm:$0xff]
    %v344 = vld [vmem:[#allocation2 + $0x780] sm:$0xff]
    %v345 = vld [vmem:[#allocation2 + $0x788] sm:$0xff]
    %v346 = vld [vmem:[#allocation2 + $0x790] sm:$0xff]
    %v347 = vld [vmem:[#allocation2 + $0x798] sm:$0xff]
    %v348 = vld [vmem:[#allocation2 + $0x7a0] sm:$0xff]
    %v349 = vld [vmem:[#allocation2 + $0x7a8] sm:$0xff]
    %v350 = vld [vmem:[#allocation2 + $0x7b0] sm:$0xff]
    %v351 = vld [vmem:[#allocation2 + $0x7b8] sm:$0xff]
    %v352 = vld [vmem:[#allocation2 + $0x7c0] sm:$0xff]
    %v353 = vld [vmem:[#allocation2 + $0x7c8] sm:$0xff]
    %v354 = vld [vmem:[#allocation2 + $0x7d0] sm:$0xff]
    %v355 = vld [vmem:[#allocation2 + $0x7d8] sm:$0xff]
    %v356 = vld [vmem:[#allocation2 + $0x7e0] sm:$0xff]
    %v357 = vld [vmem:[#allocation2 + $0x7e8] sm:$0xff]
    %v358 = vld [vmem:[#allocation2 + $0x7f0] sm:$0xff]
    %v359 = vld [vmem:[#allocation2 + $0x7f8] sm:$0xff]
    %v360 = vld [vmem:[#allocation2 + $0x800] sm:$0xff]
    %v361 = vld [vmem:[#allocation2 + $0x808] sm:$0xff]
    %v362 = vld [vmem:[#allocation2 + $0x810] sm:$0xff]
    %v363 = vld [vmem:[#allocation2 + $0x818] sm:$0xff]
    %v364 = vld [vmem:[#allocation2 + $0x820] sm:$0xff]
    %v365 = vld [vmem:[#allocation2 + $0x828] sm:$0xff]
    %v366 = vld [vmem:[#allocation2 + $0x830] sm:$0xff]
    %v367 = vld [vmem:[#allocation2 + $0x838] sm:$0xff]
    %v368 = vld [vmem:[#allocation2 + $0x840] sm:$0xff]
    %v369 = vld [vmem:[#allocation2 + $0x848] sm:$0xff]
    %v370 = vld [vmem:[#allocation2 + $0x850] sm:$0xff]
    %v371 = vld [vmem:[#allocation2 + $0x858] sm:$0xff]
    %v372 = vld [vmem:[#allocation2 + $0x860] sm:$0xff]
    %v373 = vld [vmem:[#allocation2 + $0x868] sm:$0xff]
    %v374 = vld [vmem:[#allocation2 + $0x870] sm:$0xff]
    %v375 = vld [vmem:[#allocation2 + $0x878] sm:$0xff]
    %v376 = vld [vmem:[#allocation2 + $0x880] sm:$0xff]
    %v377 = vld [vmem:[#allocation2 + $0x888] sm:$0xff]
    %v378 = vld [vmem:[#allocation2 + $0x890] sm:$0xff]
    %v379 = vld [vmem:[#allocation2 + $0x898] sm:$0xff]
    %v380 = vld [vmem:[#allocation2 + $0x8a0] sm:$0xff]
    %v381 = vld [vmem:[#allocation2 + $0x8a8] sm:$0xff]
    %v382 = vld [vmem:[#allocation2 + $0x8b0] sm:$0xff]
    %v383 = vld [vmem:[#allocation2 + $0x8b8] sm:$0xff]
    %v384 = vld [vmem:[#allocation2 + $0x8c0] sm:$0xff]
    %v385 = vld [vmem:[#allocation2 + $0x8c8] sm:$0xff]
    %v386 = vld [vmem:[#allocation2 + $0x8d0] sm:$0xff]
    %v387 = vld [vmem:[#allocation2 + $0x8d8] sm:$0xff]
    %v388 = vld [vmem:[#allocation2 + $0x8e0] sm:$0xff]
    %v389 = vld [vmem:[#allocation2 + $0x8e8] sm:$0xff]
    %v390 = vld [vmem:[#allocation2 + $0x8f0] sm:$0xff]
    %v391 = vld [vmem:[#allocation2 + $0x8f8] sm:$0xff]
    %v392 = vld [vmem:[#allocation2 + $0x900] sm:$0xff]
    %v393 = vld [vmem:[#allocation2 + $0x908] sm:$0xff]
    %v394 = vld [vmem:[#allocation2 + $0x910] sm:$0xff]
    %v395 = vld [vmem:[#allocation2 + $0x918] sm:$0xff]
    %v396 = vld [vmem:[#allocation2 + $0x920] sm:$0xff]
    %v397 = vld [vmem:[#allocation2 + $0x928] sm:$0xff]
    %v398 = vld [vmem:[#allocation2 + $0x930] sm:$0xff]
    %v399 = vld [vmem:[#allocation2 + $0x938] sm:$0xff]
    %v400 = vld [vmem:[#allocation2 + $0x940] sm:$0xff]
    %v401 = vld [vmem:[#allocation2 + $0x948] sm:$0xff]
    %v402 = vld [vmem:[#allocation2 + $0x950] sm:$0xff]
    %v403 = vld [vmem:[#allocation2 + $0x958] sm:$0xff]
    %v404 = vld [vmem:[#allocation2 + $0x960] sm:$0xff]
    %v405 = vld [vmem:[#allocation2 + $0x968] sm:$0xff]
    %v406 = vld [vmem:[#allocation2 + $0x970] sm:$0xff]
    %v407 = vld [vmem:[#allocation2 + $0x978] sm:$0xff]
    %v408 = vld [vmem:[#allocation2 + $0x980] sm:$0xff]
    %v409 = vld [vmem:[#allocation2 + $0x988] sm:$0xff]
    %v410 = vld [vmem:[#allocation2 + $0x990] sm:$0xff]
    %v411 = vld [vmem:[#allocation2 + $0x998] sm:$0xff]
    %v412 = vld [vmem:[#allocation2 + $0x9a0] sm:$0xff]
    %v413 = vld [vmem:[#allocation2 + $0x9a8] sm:$0xff]
    %v414 = vld [vmem:[#allocation2 + $0x9b0] sm:$0xff]
    %v415 = vld [vmem:[#allocation2 + $0x9b8] sm:$0xff]
    %v416 = vld [vmem:[#allocation2 + $0x9c0] sm:$0xff]
    %v417 = vld [vmem:[#allocation2 + $0x9c8] sm:$0xff]
    %v418 = vld [vmem:[#allocation2 + $0x9d0] sm:$0xff]
    %v419 = vld [vmem:[#allocation2 + $0x9d8] sm:$0xff]
    %v420 = vld [vmem:[#allocation2 + $0x9e0] sm:$0xff]
    %v421 = vld [vmem:[#allocation2 + $0x9e8] sm:$0xff]
    %v422 = vld [vmem:[#allocation2 + $0x9f0] sm:$0xff]
    %v423 = vld [vmem:[#allocation2 + $0x9f8] sm:$0xff]
    %v424 = vld [vmem:[#allocation2 + $0xa00] sm:$0xff]
    %v425 = vld [vmem:[#allocation2 + $0xa08] sm:$0xff]
    %v426 = vld [vmem:[#allocation2 + $0xa10] sm:$0xff]
    %v427 = vld [vmem:[#allocation2 + $0xa18] sm:$0xff]
    %v428 = vld [vmem:[#allocation2 + $0xa20] sm:$0xff]
    %v429 = vld [vmem:[#allocation2 + $0xa28] sm:$0xff]
    %v430 = vld [vmem:[#allocation2 + $0xa30] sm:$0xff]
    %v431 = vld [vmem:[#allocation2 + $0xa38] sm:$0xff]
    %v432 = vld [vmem:[#allocation2 + $0xa40] sm:$0xff]
    %v433 = vld [vmem:[#allocation2 + $0xa48] sm:$0xff]
    %v434 = vld [vmem:[#allocation2 + $0xa50] sm:$0xff]
    %v435 = vld [vmem:[#allocation2 + $0xa58] sm:$0xff]
    %v436 = vld [vmem:[#allocation2 + $0xa60] sm:$0xff]
    %v437 = vld [vmem:[#allocation2 + $0xa68] sm:$0xff]
    %v438 = vld [vmem:[#allocation2 + $0xa70] sm:$0xff]
    %v439 = vld [vmem:[#allocation2 + $0xa78] sm:$0xff]
    %v440 = vld [vmem:[#allocation2 + $0xa80] sm:$0xff]
    %v441 = vld [vmem:[#allocation2 + $0xa88] sm:$0xff]
    %v442 = vld [vmem:[#allocation2 + $0xa90] sm:$0xff]
    %v443 = vld [vmem:[#allocation2 + $0xa98] sm:$0xff]
    %v444 = vld [vmem:[#allocation2 + $0xaa0] sm:$0xff]
    %v445 = vld [vmem:[#allocation2 + $0xaa8] sm:$0xff]
    %v446 = vld [vmem:[#allocation2 + $0xab0] sm:$0xff]
    %v447 = vld [vmem:[#allocation2 + $0xab8] sm:$0xff]
    %v448 = vld [vmem:[#allocation2 + $0xac0] sm:$0xff]
    %v449 = vld [vmem:[#allocation2 + $0xac8] sm:$0xff]
    %v450 = vld [vmem:[#allocation2 + $0xad0] sm:$0xff]
    %v451 = vld [vmem:[#allocation2 + $0xad8] sm:$0xff]
    %v452 = vld [vmem:[#allocation2 + $0xae0] sm:$0xff]
    %v453 = vld [vmem:[#allocation2 + $0xae8] sm:$0xff]
    %v454 = vld [vmem:[#allocation2 + $0xaf0] sm:$0xff]
    %v455 = vld [vmem:[#allocation2 + $0xaf8] sm:$0xff]
    %v456 = vld [vmem:[#allocation2 + $0xb00] sm:$0xff]
    %v457 = vld [vmem:[#allocation2 + $0xb08] sm:$0xff]
    %v458 = vld [vmem:[#allocation2 + $0xb10] sm:$0xff]
    %v459 = vld [vmem:[#allocation2 + $0xb18] sm:$0xff]
    %v460 = vld [vmem:[#allocation2 + $0xb20] sm:$0xff]
    %v461 = vld [vmem:[#allocation2 + $0xb28] sm:$0xff]
    %v462 = vld [vmem:[#allocation2 + $0xb30] sm:$0xff]
    %v463 = vld [vmem:[#allocation2 + $0xb38] sm:$0xff]
    %v464 = vld [vmem:[#allocation2 + $0xb40] sm:$0xff]
    %v465 = vld [vmem:[#allocation2 + $0xb48] sm:$0xff]
    %v466 = vld [vmem:[#allocation2 + $0xb50] sm:$0xff]
    %v467 = vld [vmem:[#allocation2 + $0xb58] sm:$0xff]
    %v468 = vld [vmem:[#allocation2 + $0xb60] sm:$0xff]
    %v469 = vld [vmem:[#allocation2 + $0xb68] sm:$0xff]
    %v470 = vld [vmem:[#allocation2 + $0xb70] sm:$0xff]
    %v471 = vld [vmem:[#allocation2 + $0xb78] sm:$0xff]
    %v472 = vld [vmem:[#allocation2 + $0xb80] sm:$0xff]
    %v473 = vld [vmem:[#allocation2 + $0xb88] sm:$0xff]
    %v474 = vld [vmem:[#allocation2 + $0xb90] sm:$0xff]
    %v475 = vld [vmem:[#allocation2 + $0xb98] sm:$0xff]
    %v476 = vld [vmem:[#allocation2 + $0xba0] sm:$0xff]
    %v477 = vld [vmem:[#allocation2 + $0xba8] sm:$0xff]
    %v478 = vld [vmem:[#allocation2 + $0xbb0] sm:$0xff]
    %v479 = vld [vmem:[#allocation2 + $0xbb8] sm:$0xff]
    %v480 = vld [vmem:[#allocation2 + $0xbc0] sm:$0xff]
    %v481 = vld [vmem:[#allocation2 + $0xbc8] sm:$0xff]
    %v482 = vld [vmem:[#allocation2 + $0xbd0] sm:$0xff]
    %v483 = vld [vmem:[#allocation2 + $0xbd8] sm:$0xff]
    %v484 = vld [vmem:[#allocation2 + $0xbe0] sm:$0xff]
    %v485 = vld [vmem:[#allocation2 + $0xbe8] sm:$0xff]
    %v486 = vld [vmem:[#allocation2 + $0xbf0] sm:$0xff]
    %v487 = vld [vmem:[#allocation2 + $0xbf8] sm:$0xff]
    %v488 = vld [vmem:[#allocation5] sm:$0x1]
    %v490 = vperm.slane %v488, 0
    %516 = vst [vmem:[#allocation1] ss:$4 sm:$0xff] %v80
    %s517 = scalar_lea.vmem [#allocation1], 1
    %518 = vst [vmem:[%s517] ss:$4 sm:$0xff] %v86
    %s519 = scalar_lea.vmem [#allocation1], 2
    %520 = vst [vmem:[%s519] ss:$4 sm:$0xff] %v92
    %s521 = scalar_lea.vmem [#allocation1], 3
    %522 = vst [vmem:[%s521] ss:$4 sm:$0xff] %v98
    %s523 = scalar_lea.vmem [#allocation1], 32
    %524 = vst [vmem:[%s523] ss:$4 sm:$0xff] %v81
    %s525 = scalar_lea.vmem [#allocation1], 33
    %526 = vst [vmem:[%s525] ss:$4 sm:$0xff] %v87
    %s527 = scalar_lea.vmem [#allocation1], 34
    %528 = vst [vmem:[%s527] ss:$4 sm:$0xff] %v93
    %s529 = scalar_lea.vmem [#allocation1], 35
    %530 = vst [vmem:[%s529] ss:$4 sm:$0xff] %v99
    %v531 = vld.sshfl [vmem:[#allocation1] sm:$0xff pattern:$0x73625140]
    %v532 = vld.sshfl [vmem:[#allocation1 + $0x8] sm:$0xff pattern:$0x73625140]
    %v533 = vld.sshfl [vmem:[#allocation1 + $0x10] sm:$0xff pattern:$0x73625140]
    %v534 = vld.sshfl [vmem:[#allocation1 + $0x18] sm:$0xff pattern:$0x73625140]
    %v535 = vld.sshfl [vmem:[#allocation1 + $0x20] sm:$0xff pattern:$0x73625140]
    %v536 = vld.sshfl [vmem:[#allocation1 + $0x28] sm:$0xff pattern:$0x73625140]
    %v537 = vld.sshfl [vmem:[#allocation1 + $0x30] sm:$0xff pattern:$0x73625140]
    %v538 = vld.sshfl [vmem:[#allocation1 + $0x38] sm:$0xff pattern:$0x73625140]
    %539 = vst [vmem:[#allocation1] ss:$4 sm:$0xff] %v82
    %540 = vst [vmem:[%s517] ss:$4 sm:$0xff] %v88
    %541 = vst [vmem:[%s519] ss:$4 sm:$0xff] %v94
    %542 = vst [vmem:[%s521] ss:$4 sm:$0xff] %v100
    %543 = vst [vmem:[%s523] ss:$4 sm:$0xff] %v83
    %544 = vst [vmem:[%s525] ss:$4 sm:$0xff] %v89
    %545 = vst [vmem:[%s527] ss:$4 sm:$0xff] %v95
    %546 = vst [vmem:[%s529] ss:$4 sm:$0xff] %v101
    %v547 = vld.sshfl [vmem:[#allocation1] sm:$0xff pattern:$0x73625140]
    %v548 = vld.sshfl [vmem:[#allocation1 + $0x8] sm:$0xff pattern:$0x73625140]
    %v549 = vld.sshfl [vmem:[#allocation1 + $0x10] sm:$0xff pattern:$0x73625140]
    %v550 = vld.sshfl [vmem:[#allocation1 + $0x18] sm:$0xff pattern:$0x73625140]
    %v551 = vld.sshfl [vmem:[#allocation1 + $0x20] sm:$0xff pattern:$0x73625140]
    %v552 = vld.sshfl [vmem:[#allocation1 + $0x28] sm:$0xff pattern:$0x73625140]
    %v553 = vld.sshfl [vmem:[#allocation1 + $0x30] sm:$0xff pattern:$0x73625140]
    %v554 = vld.sshfl [vmem:[#allocation1 + $0x38] sm:$0xff pattern:$0x73625140]
    %555 = vst [vmem:[#allocation1] ss:$4 sm:$0xff] %v84
    %556 = vst [vmem:[%s517] ss:$4 sm:$0xff] %v90
    %557 = vst [vmem:[%s519] ss:$4 sm:$0xff] %v96
    %558 = vst [vmem:[%s521] ss:$4 sm:$0xff] %v102
    %559 = vst [vmem:[%s523] ss:$4 sm:$0xff] %v85
    %560 = vst [vmem:[%s525] ss:$4 sm:$0xff] %v91
    %561 = vst [vmem:[%s527] ss:$4 sm:$0xff] %v97
    %562 = vst [vmem:[%s529] ss:$4 sm:$0xff] %v103
    %v563 = vld.sshfl [vmem:[#allocation1] sm:$0xff pattern:$0x73625140]
    %v564 = vld.sshfl [vmem:[#allocation1 + $0x8] sm:$0xff pattern:$0x73625140]
    %v565 = vld.sshfl [vmem:[#allocation1 + $0x10] sm:$0xff pattern:$0x73625140]
    %v566 = vld.sshfl [vmem:[#allocation1 + $0x18] sm:$0xff pattern:$0x73625140]
    %v567 = vld.sshfl [vmem:[#allocation1 + $0x20] sm:$0xff pattern:$0x73625140]
    %v568 = vld.sshfl [vmem:[#allocation1 + $0x28] sm:$0xff pattern:$0x73625140]
    %v569 = vld.sshfl [vmem:[#allocation1 + $0x30] sm:$0xff pattern:$0x73625140]
    %v570 = vld.sshfl [vmem:[#allocation1 + $0x38] sm:$0xff pattern:$0x73625140]
    %595 = vmatpush.msra.mxu0 %v119
    %596 = vmatpush.msra.mxu0 %v118
    %597 = vmatpush.msra.mxu0 %v117
    %598 = vmatpush.msra.mxu0 %v116
    %599 = vmatpush.msra.mxu0 %v115
    %600 = vmatpush.msra.mxu0 %v114
    %601 = vmatpush.msra.mxu0 %v113
    %602 = vmatpush.msra.mxu0 %v112
    %603 = vmatpush.msra.mxu0 %v111
    %604 = vmatpush.msra.mxu0 %v110
    %605 = vmatpush.msra.mxu0 %v109
    %606 = vmatpush.msra.mxu0 %v108
    %607 = vmatpush.msra.mxu0 %v107
    %608 = vmatpush.msra.mxu0 %v106
    %609 = vmatpush.msra.mxu0 %v105
    %610 = vmatpush.msra.mxu0 %v104
    %611 = vmatmul.f32.gmra.mxu0 %v531
    %v612 = vpop.f32.mrf.mxu0
    %v613 = vadd.f32 %v490, %v612
    %614 = vdwg.mxu0
    %615 = vmatpush.msra.mxu0 %v135
    %616 = vmatpush.msra.mxu0 %v134
    %617 = vmatpush.msra.mxu0 %v133
    %618 = vmatpush.msra.mxu0 %v132
    %619 = vmatpush.msra.mxu0 %v131
    %620 = vmatpush.msra.mxu0 %v130
    %621 = vmatpush.msra.mxu0 %v129
    %622 = vmatpush.msra.mxu0 %v128
    %623 = vmatpush.msra.mxu0 %v127
    %624 = vmatpush.msra.mxu0 %v126
    %625 = vmatpush.msra.mxu0 %v125
    %626 = vmatpush.msra.mxu0 %v124
    %627 = vmatpush.msra.mxu0 %v123
    %628 = vmatpush.msra.mxu0 %v122
    %629 = vmatpush.msra.mxu0 %v121
    %630 = vmatpush.msra.mxu0 %v120
    %631 = vmatmul.f32.gmra.mxu0 %v532
    %v632 = vpop.f32.mrf.mxu0
    %v633 = vadd.f32 %v613, %v632
    %634 = vdwg.mxu0
    %635 = vmatpush.msra.mxu0 %v151
    %636 = vmatpush.msra.mxu0 %v150
    %637 = vmatpush.msra.mxu0 %v149
    %638 = vmatpush.msra.mxu0 %v148
    %639 = vmatpush.msra.mxu0 %v147
    %640 = vmatpush.msra.mxu0 %v146
    %641 = vmatpush.msra.mxu0 %v145
    %642 = vmatpush.msra.mxu0 %v144
    %643 = vmatpush.msra.mxu0 %v143
    %644 = vmatpush.msra.mxu0 %v142
    %645 = vmatpush.msra.mxu0 %v141
    %646 = vmatpush.msra.mxu0 %v140
    %647 = vmatpush.msra.mxu0 %v139
    %648 = vmatpush.msra.mxu0 %v138
    %649 = vmatpush.msra.mxu0 %v137
    %650 = vmatpush.msra.mxu0 %v136
    %651 = vmatmul.f32.gmra.mxu0 %v533
    %v652 = vpop.f32.mrf.mxu0
    %v653 = vadd.f32 %v633, %v652
    %654 = vdwg.mxu0
    %655 = vmatpush.msra.mxu0 %v167
    %656 = vmatpush.msra.mxu0 %v166
    %657 = vmatpush.msra.mxu0 %v165
    %658 = vmatpush.msra.mxu0 %v164
    %659 = vmatpush.msra.mxu0 %v163
    %660 = vmatpush.msra.mxu0 %v162
    %661 = vmatpush.msra.mxu0 %v161
    %662 = vmatpush.msra.mxu0 %v160
    %663 = vmatpush.msra.mxu0 %v159
    %664 = vmatpush.msra.mxu0 %v158
    %665 = vmatpush.msra.mxu0 %v157
    %666 = vmatpush.msra.mxu0 %v156
    %667 = vmatpush.msra.mxu0 %v155
    %668 = vmatpush.msra.mxu0 %v154
    %669 = vmatpush.msra.mxu0 %v153
    %670 = vmatpush.msra.mxu0 %v152
    %671 = vmatmul.f32.gmra.mxu0 %v534
    %v672 = vpop.f32.mrf.mxu0
    %v673 = vadd.f32 %v653, %v672
    %674 = vdwg.mxu0
    %675 = vmatpush.msra.mxu0 %v183
    %676 = vmatpush.msra.mxu0 %v182
    %677 = vmatpush.msra.mxu0 %v181
    %678 = vmatpush.msra.mxu0 %v180
    %679 = vmatpush.msra.mxu0 %v179
    %680 = vmatpush.msra.mxu0 %v178
    %681 = vmatpush.msra.mxu0 %v177
    %682 = vmatpush.msra.mxu0 %v176
    %683 = vmatpush.msra.mxu0 %v175
    %684 = vmatpush.msra.mxu0 %v174
    %685 = vmatpush.msra.mxu0 %v173
    %686 = vmatpush.msra.mxu0 %v172
    %687 = vmatpush.msra.mxu0 %v171
    %688 = vmatpush.msra.mxu0 %v170
    %689 = vmatpush.msra.mxu0 %v169
    %690 = vmatpush.msra.mxu0 %v168
    %691 = vmatmul.f32.gmra.mxu0 %v535
    %v692 = vpop.f32.mrf.mxu0
    %v693 = vadd.f32 %v673, %v692
    %694 = vdwg.mxu0
    %695 = vmatpush.msra.mxu0 %v199
    %696 = vmatpush.msra.mxu0 %v198
    %697 = vmatpush.msra.mxu0 %v197
    %698 = vmatpush.msra.mxu0 %v196
    %699 = vmatpush.msra.mxu0 %v195
    %700 = vmatpush.msra.mxu0 %v194
    %701 = vmatpush.msra.mxu0 %v193
    %702 = vmatpush.msra.mxu0 %v192
    %703 = vmatpush.msra.mxu0 %v191
    %704 = vmatpush.msra.mxu0 %v190
    %705 = vmatpush.msra.mxu0 %v189
    %706 = vmatpush.msra.mxu0 %v188
    %707 = vmatpush.msra.mxu0 %v187
    %708 = vmatpush.msra.mxu0 %v186
    %709 = vmatpush.msra.mxu0 %v185
    %710 = vmatpush.msra.mxu0 %v184
    %711 = vmatmul.f32.gmra.mxu0 %v536
    %v712 = vpop.f32.mrf.mxu0
    %v713 = vadd.f32 %v693, %v712
    %714 = vdwg.mxu0
    %715 = vmatpush.msra.mxu0 %v215
    %716 = vmatpush.msra.mxu0 %v214
    %717 = vmatpush.msra.mxu0 %v213
    %718 = vmatpush.msra.mxu0 %v212
    %719 = vmatpush.msra.mxu0 %v211
    %720 = vmatpush.msra.mxu0 %v210
    %721 = vmatpush.msra.mxu0 %v209
    %722 = vmatpush.msra.mxu0 %v208
    %723 = vmatpush.msra.mxu0 %v207
    %724 = vmatpush.msra.mxu0 %v206
    %725 = vmatpush.msra.mxu0 %v205
    %726 = vmatpush.msra.mxu0 %v204
    %727 = vmatpush.msra.mxu0 %v203
    %728 = vmatpush.msra.mxu0 %v202
    %729 = vmatpush.msra.mxu0 %v201
    %730 = vmatpush.msra.mxu0 %v200
    %731 = vmatmul.f32.gmra.mxu0 %v537
    %v732 = vpop.f32.mrf.mxu0
    %v733 = vadd.f32 %v713, %v732
    %734 = vdwg.mxu0
    %735 = vmatpush.msra.mxu0 %v231
    %736 = vmatpush.msra.mxu0 %v230
    %737 = vmatpush.msra.mxu0 %v229
    %738 = vmatpush.msra.mxu0 %v228
    %739 = vmatpush.msra.mxu0 %v227
    %740 = vmatpush.msra.mxu0 %v226
    %741 = vmatpush.msra.mxu0 %v225
    %742 = vmatpush.msra.mxu0 %v224
    %743 = vmatpush.msra.mxu0 %v223
    %744 = vmatpush.msra.mxu0 %v222
    %745 = vmatpush.msra.mxu0 %v221
    %746 = vmatpush.msra.mxu0 %v220
    %747 = vmatpush.msra.mxu0 %v219
    %748 = vmatpush.msra.mxu0 %v218
    %749 = vmatpush.msra.mxu0 %v217
    %750 = vmatpush.msra.mxu0 %v216
    %751 = vmatmul.f32.gmra.mxu0 %v538
    %v752 = vpop.f32.mrf.mxu0
    %v753 = vadd.f32 %v733, %v752
    %754 = vdwg.mxu0
    %755 = vmatpush.msra.mxu0 %v247
    %756 = vmatpush.msra.mxu0 %v246
    %757 = vmatpush.msra.mxu0 %v245
    %758 = vmatpush.msra.mxu0 %v244
    %759 = vmatpush.msra.mxu0 %v243
    %760 = vmatpush.msra.mxu0 %v242
    %761 = vmatpush.msra.mxu0 %v241
    %762 = vmatpush.msra.mxu0 %v240
    %763 = vmatpush.msra.mxu0 %v239
    %764 = vmatpush.msra.mxu0 %v238
    %765 = vmatpush.msra.mxu0 %v237
    %766 = vmatpush.msra.mxu0 %v236
    %767 = vmatpush.msra.mxu0 %v235
    %768 = vmatpush.msra.mxu0 %v234
    %769 = vmatpush.msra.mxu0 %v233
    %770 = vmatpush.msra.mxu0 %v232
    %771 = vmatmul.f32.gmra.mxu0 %v547
    %v772 = vpop.f32.mrf.mxu0
    %v773 = vadd.f32 %v753, %v772
    %774 = vdwg.mxu0
    %775 = vmatpush.msra.mxu0 %v263
    %776 = vmatpush.msra.mxu0 %v262
    %777 = vmatpush.msra.mxu0 %v261
    %778 = vmatpush.msra.mxu0 %v260
    %779 = vmatpush.msra.mxu0 %v259
    %780 = vmatpush.msra.mxu0 %v258
    %781 = vmatpush.msra.mxu0 %v257
    %782 = vmatpush.msra.mxu0 %v256
    %783 = vmatpush.msra.mxu0 %v255
    %784 = vmatpush.msra.mxu0 %v254
    %785 = vmatpush.msra.mxu0 %v253
    %786 = vmatpush.msra.mxu0 %v252
    %787 = vmatpush.msra.mxu0 %v251
    %788 = vmatpush.msra.mxu0 %v250
    %789 = vmatpush.msra.mxu0 %v249
    %790 = vmatpush.msra.mxu0 %v248
    %791 = vmatmul.f32.gmra.mxu0 %v548
    %v792 = vpop.f32.mrf.mxu0
    %v793 = vadd.f32 %v773, %v792
    %794 = vdwg.mxu0
    %795 = vmatpush.msra.mxu0 %v279
    %796 = vmatpush.msra.mxu0 %v278
    %797 = vmatpush.msra.mxu0 %v277
    %798 = vmatpush.msra.mxu0 %v276
    %799 = vmatpush.msra.mxu0 %v275
    %800 = vmatpush.msra.mxu0 %v274
    %801 = vmatpush.msra.mxu0 %v273
    %802 = vmatpush.msra.mxu0 %v272
    %803 = vmatpush.msra.mxu0 %v271
    %804 = vmatpush.msra.mxu0 %v270
    %805 = vmatpush.msra.mxu0 %v269
    %806 = vmatpush.msra.mxu0 %v268
    %807 = vmatpush.msra.mxu0 %v267
    %808 = vmatpush.msra.mxu0 %v266
    %809 = vmatpush.msra.mxu0 %v265
    %810 = vmatpush.msra.mxu0 %v264
    %811 = vmatmul.f32.gmra.mxu0 %v549
    %v812 = vpop.f32.mrf.mxu0
    %v813 = vadd.f32 %v793, %v812
    %814 = vdwg.mxu0
    %815 = vmatpush.msra.mxu0 %v295
    %816 = vmatpush.msra.mxu0 %v294
    %817 = vmatpush.msra.mxu0 %v293
    %818 = vmatpush.msra.mxu0 %v292
    %819 = vmatpush.msra.mxu0 %v291
    %820 = vmatpush.msra.mxu0 %v290
    %821 = vmatpush.msra.mxu0 %v289
    %822 = vmatpush.msra.mxu0 %v288
    %823 = vmatpush.msra.mxu0 %v287
    %824 = vmatpush.msra.mxu0 %v286
    %825 = vmatpush.msra.mxu0 %v285
    %826 = vmatpush.msra.mxu0 %v284
    %827 = vmatpush.msra.mxu0 %v283
    %828 = vmatpush.msra.mxu0 %v282
    %829 = vmatpush.msra.mxu0 %v281
    %830 = vmatpush.msra.mxu0 %v280
    %831 = vmatmul.f32.gmra.mxu0 %v550
    %v832 = vpop.f32.mrf.mxu0
    %v833 = vadd.f32 %v813, %v832
    %834 = vdwg.mxu0
    %835 = vmatpush.msra.mxu0 %v311
    %836 = vmatpush.msra.mxu0 %v310
    %837 = vmatpush.msra.mxu0 %v309
    %838 = vmatpush.msra.mxu0 %v308
    %839 = vmatpush.msra.mxu0 %v307
    %840 = vmatpush.msra.mxu0 %v306
    %841 = vmatpush.msra.mxu0 %v305
    %842 = vmatpush.msra.mxu0 %v304
    %843 = vmatpush.msra.mxu0 %v303
    %844 = vmatpush.msra.mxu0 %v302
    %845 = vmatpush.msra.mxu0 %v301
    %846 = vmatpush.msra.mxu0 %v300
    %847 = vmatpush.msra.mxu0 %v299
    %848 = vmatpush.msra.mxu0 %v298
    %849 = vmatpush.msra.mxu0 %v297
    %850 = vmatpush.msra.mxu0 %v296
    %851 = vmatmul.f32.gmra.mxu0 %v551
    %v852 = vpop.f32.mrf.mxu0
    %v853 = vadd.f32 %v833, %v852
    %854 = vdwg.mxu0
    %855 = vmatpush.msra.mxu0 %v327
    %856 = vmatpush.msra.mxu0 %v326
    %857 = vmatpush.msra.mxu0 %v325
    %858 = vmatpush.msra.mxu0 %v324
    %859 = vmatpush.msra.mxu0 %v323
    %860 = vmatpush.msra.mxu0 %v322
    %861 = vmatpush.msra.mxu0 %v321
    %862 = vmatpush.msra.mxu0 %v320
    %863 = vmatpush.msra.mxu0 %v319
    %864 = vmatpush.msra.mxu0 %v318
    %865 = vmatpush.msra.mxu0 %v317
    %866 = vmatpush.msra.mxu0 %v316
    %867 = vmatpush.msra.mxu0 %v315
    %868 = vmatpush.msra.mxu0 %v314
    %869 = vmatpush.msra.mxu0 %v313
    %870 = vmatpush.msra.mxu0 %v312
    %871 = vmatmul.f32.gmra.mxu0 %v552
    %v872 = vpop.f32.mrf.mxu0
    %v873 = vadd.f32 %v853, %v872
    %874 = vdwg.mxu0
    %875 = vmatpush.msra.mxu0 %v343
    %876 = vmatpush.msra.mxu0 %v342
    %877 = vmatpush.msra.mxu0 %v341
    %878 = vmatpush.msra.mxu0 %v340
    %879 = vmatpush.msra.mxu0 %v339
    %880 = vmatpush.msra.mxu0 %v338
    %881 = vmatpush.msra.mxu0 %v337
    %882 = vmatpush.msra.mxu0 %v336
    %883 = vmatpush.msra.mxu0 %v335
    %884 = vmatpush.msra.mxu0 %v334
    %885 = vmatpush.msra.mxu0 %v333
    %886 = vmatpush.msra.mxu0 %v332
    %887 = vmatpush.msra.mxu0 %v331
    %888 = vmatpush.msra.mxu0 %v330
    %889 = vmatpush.msra.mxu0 %v329
    %890 = vmatpush.msra.mxu0 %v328
    %891 = vmatmul.f32.gmra.mxu0 %v553
    %v892 = vpop.f32.mrf.mxu0
    %v893 = vadd.f32 %v873, %v892
    %894 = vdwg.mxu0
    %895 = vmatpush.msra.mxu0 %v359
    %896 = vmatpush.msra.mxu0 %v358
    %897 = vmatpush.msra.mxu0 %v357
    %898 = vmatpush.msra.mxu0 %v356
    %899 = vmatpush.msra.mxu0 %v355
    %900 = vmatpush.msra.mxu0 %v354
    %901 = vmatpush.msra.mxu0 %v353
    %902 = vmatpush.msra.mxu0 %v352
    %903 = vmatpush.msra.mxu0 %v351
    %904 = vmatpush.msra.mxu0 %v350
    %905 = vmatpush.msra.mxu0 %v349
    %906 = vmatpush.msra.mxu0 %v348
    %907 = vmatpush.msra.mxu0 %v347
    %908 = vmatpush.msra.mxu0 %v346
    %909 = vmatpush.msra.mxu0 %v345
    %910 = vmatpush.msra.mxu0 %v344
    %911 = vmatmul.f32.gmra.mxu0 %v554
    %v912 = vpop.f32.mrf.mxu0
    %v913 = vadd.f32 %v893, %v912
    %914 = vdwg.mxu0
    %915 = vmatpush.msra.mxu0 %v375
    %916 = vmatpush.msra.mxu0 %v374
    %917 = vmatpush.msra.mxu0 %v373
    %918 = vmatpush.msra.mxu0 %v372
    %919 = vmatpush.msra.mxu0 %v371
    %920 = vmatpush.msra.mxu0 %v370
    %921 = vmatpush.msra.mxu0 %v369
    %922 = vmatpush.msra.mxu0 %v368
    %923 = vmatpush.msra.mxu0 %v367
    %924 = vmatpush.msra.mxu0 %v366
    %925 = vmatpush.msra.mxu0 %v365
    %926 = vmatpush.msra.mxu0 %v364
    %927 = vmatpush.msra.mxu0 %v363
    %928 = vmatpush.msra.mxu0 %v362
    %929 = vmatpush.msra.mxu0 %v361
    %930 = vmatpush.msra.mxu0 %v360
    %931 = vmatmul.f32.gmra.mxu0 %v563
    %v932 = vpop.f32.mrf.mxu0
    %v933 = vadd.f32 %v913, %v932
    %934 = vdwg.mxu0
    %935 = vmatpush.msra.mxu0 %v391
    %936 = vmatpush.msra.mxu0 %v390
    %937 = vmatpush.msra.mxu0 %v389
    %938 = vmatpush.msra.mxu0 %v388
    %939 = vmatpush.msra.mxu0 %v387
    %940 = vmatpush.msra.mxu0 %v386
    %941 = vmatpush.msra.mxu0 %v385
    %942 = vmatpush.msra.mxu0 %v384
    %943 = vmatpush.msra.mxu0 %v383
    %944 = vmatpush.msra.mxu0 %v382
    %945 = vmatpush.msra.mxu0 %v381
    %946 = vmatpush.msra.mxu0 %v380
    %947 = vmatpush.msra.mxu0 %v379
    %948 = vmatpush.msra.mxu0 %v378
    %949 = vmatpush.msra.mxu0 %v377
    %950 = vmatpush.msra.mxu0 %v376
    %951 = vmatmul.f32.gmra.mxu0 %v564
    %v952 = vpop.f32.mrf.mxu0
    %v953 = vadd.f32 %v933, %v952
    %954 = vdwg.mxu0
    %955 = vmatpush.msra.mxu0 %v407
    %956 = vmatpush.msra.mxu0 %v406
    %957 = vmatpush.msra.mxu0 %v405
    %958 = vmatpush.msra.mxu0 %v404
    %959 = vmatpush.msra.mxu0 %v403
    %960 = vmatpush.msra.mxu0 %v402
    %961 = vmatpush.msra.mxu0 %v401
    %962 = vmatpush.msra.mxu0 %v400
    %963 = vmatpush.msra.mxu0 %v399
    %964 = vmatpush.msra.mxu0 %v398
    %965 = vmatpush.msra.mxu0 %v397
    %966 = vmatpush.msra.mxu0 %v396
    %967 = vmatpush.msra.mxu0 %v395
    %968 = vmatpush.msra.mxu0 %v394
    %969 = vmatpush.msra.mxu0 %v393
    %970 = vmatpush.msra.mxu0 %v392
    %971 = vmatmul.f32.gmra.mxu0 %v565
    %v972 = vpop.f32.mrf.mxu0
    %v973 = vadd.f32 %v953, %v972
    %974 = vdwg.mxu0
    %975 = vmatpush.msra.mxu0 %v423
    %976 = vmatpush.msra.mxu0 %v422
    %977 = vmatpush.msra.mxu0 %v421
    %978 = vmatpush.msra.mxu0 %v420
    %979 = vmatpush.msra.mxu0 %v419
    %980 = vmatpush.msra.mxu0 %v418
    %981 = vmatpush.msra.mxu0 %v417
    %982 = vmatpush.msra.mxu0 %v416
    %983 = vmatpush.msra.mxu0 %v415
    %984 = vmatpush.msra.mxu0 %v414
    %985 = vmatpush.msra.mxu0 %v413
    %986 = vmatpush.msra.mxu0 %v412
    %987 = vmatpush.msra.mxu0 %v411
    %988 = vmatpush.msra.mxu0 %v410
    %989 = vmatpush.msra.mxu0 %v409
    %990 = vmatpush.msra.mxu0 %v408
    %991 = vmatmul.f32.gmra.mxu0 %v566
    %v992 = vpop.f32.mrf.mxu0
    %v993 = vadd.f32 %v973, %v992
    %994 = vdwg.mxu0
    %995 = vmatpush.msra.mxu0 %v439
    %996 = vmatpush.msra.mxu0 %v438
    %997 = vmatpush.msra.mxu0 %v437
    %998 = vmatpush.msra.mxu0 %v436
    %999 = vmatpush.msra.mxu0 %v435
    %1000 = vmatpush.msra.mxu0 %v434
    %1001 = vmatpush.msra.mxu0 %v433
    %1002 = vmatpush.msra.mxu0 %v432
    %1003 = vmatpush.msra.mxu0 %v431
    %1004 = vmatpush.msra.mxu0 %v430
    %1005 = vmatpush.msra.mxu0 %v429
    %1006 = vmatpush.msra.mxu0 %v428
    %1007 = vmatpush.msra.mxu0 %v427
    %1008 = vmatpush.msra.mxu0 %v426
    %1009 = vmatpush.msra.mxu0 %v425
    %1010 = vmatpush.msra.mxu0 %v424
    %1011 = vmatmul.f32.gmra.mxu0 %v567
    %v1012 = vpop.f32.mrf.mxu0
    %v1013 = vadd.f32 %v993, %v1012
    %1014 = vdwg.mxu0
    %1015 = vmatpush.msra.mxu0 %v455
    %1016 = vmatpush.msra.mxu0 %v454
    %1017 = vmatpush.msra.mxu0 %v453
    %1018 = vmatpush.msra.mxu0 %v452
    %1019 = vmatpush.msra.mxu0 %v451
    %1020 = vmatpush.msra.mxu0 %v450
    %1021 = vmatpush.msra.mxu0 %v449
    %1022 = vmatpush.msra.mxu0 %v448
    %1023 = vmatpush.msra.mxu0 %v447
    %1024 = vmatpush.msra.mxu0 %v446
    %1025 = vmatpush.msra.mxu0 %v445
    %1026 = vmatpush.msra.mxu0 %v444
    %1027 = vmatpush.msra.mxu0 %v443
    %1028 = vmatpush.msra.mxu0 %v442
    %1029 = vmatpush.msra.mxu0 %v441
    %1030 = vmatpush.msra.mxu0 %v440
    %1031 = vmatmul.f32.gmra.mxu0 %v568
    %v1032 = vpop.f32.mrf.mxu0
    %v1033 = vadd.f32 %v1013, %v1032
    %1034 = vdwg.mxu0
    %1035 = vmatpush.msra.mxu0 %v471
    %1036 = vmatpush.msra.mxu0 %v470
    %1037 = vmatpush.msra.mxu0 %v469
    %1038 = vmatpush.msra.mxu0 %v468
    %1039 = vmatpush.msra.mxu0 %v467
    %1040 = vmatpush.msra.mxu0 %v466
    %1041 = vmatpush.msra.mxu0 %v465
    %1042 = vmatpush.msra.mxu0 %v464
    %1043 = vmatpush.msra.mxu0 %v463
    %1044 = vmatpush.msra.mxu0 %v462
    %1045 = vmatpush.msra.mxu0 %v461
    %1046 = vmatpush.msra.mxu0 %v460
    %1047 = vmatpush.msra.mxu0 %v459
    %1048 = vmatpush.msra.mxu0 %v458
    %1049 = vmatpush.msra.mxu0 %v457
    %1050 = vmatpush.msra.mxu0 %v456
    %1051 = vmatmul.f32.gmra.mxu0 %v569
    %v1052 = vpop.f32.mrf.mxu0
    %v1053 = vadd.f32 %v1033, %v1052
    %1054 = vdwg.mxu0
    %1055 = vmatpush.msra.mxu0 %v487
    %1056 = vmatpush.msra.mxu0 %v486
    %1057 = vmatpush.msra.mxu0 %v485
    %1058 = vmatpush.msra.mxu0 %v484
    %1059 = vmatpush.msra.mxu0 %v483
    %1060 = vmatpush.msra.mxu0 %v482
    %1061 = vmatpush.msra.mxu0 %v481
    %1062 = vmatpush.msra.mxu0 %v480
    %1063 = vmatpush.msra.mxu0 %v479
    %1064 = vmatpush.msra.mxu0 %v478
    %1065 = vmatpush.msra.mxu0 %v477
    %1066 = vmatpush.msra.mxu0 %v476
    %1067 = vmatpush.msra.mxu0 %v475
    %1068 = vmatpush.msra.mxu0 %v474
    %1069 = vmatpush.msra.mxu0 %v473
    %1070 = vmatpush.msra.mxu0 %v472
    %1071 = vmatmul.f32.gmra.mxu0 %v570
    %v1072 = vpop.f32.mrf.mxu0
    %v1073 = vadd.f32 %v1053, %v1072
    %1074 = vdwg.mxu0
    %v1075 = vmax.f32 %v1073, 0.0
    %v1076 = vld [vmem:[#allocation7] sm:$0xff]
    %v1077 = vld [vmem:[#allocation7 + $0x8] sm:$0xff]
    %v1078 = vld [vmem:[#allocation7 + $0x10] sm:$0xff]
    %v1079 = vld [vmem:[#allocation7 + $0x18] sm:$0xff]
    %v1080 = vld [vmem:[#allocation7 + $0x20] sm:$0xff]
    %v1081 = vld [vmem:[#allocation7 + $0x28] sm:$0xff]
    %v1082 = vld [vmem:[#allocation7 + $0x30] sm:$0xff]
    %v1083 = vld [vmem:[#allocation7 + $0x38] sm:$0xff]
    %v1084 = vld [vmem:[#allocation7 + $0x40] sm:$0xff]
    %v1085 = vld [vmem:[#allocation7 + $0x48] sm:$0xff]
    %v1086 = vld [vmem:[#allocation7 + $0x50] sm:$0xff]
    %v1087 = vld [vmem:[#allocation7 + $0x58] sm:$0xff]
    %v1088 = vld [vmem:[#allocation7 + $0x60] sm:$0xff]
    %v1089 = vld [vmem:[#allocation7 + $0x68] sm:$0xff]
    %v1090 = vld [vmem:[#allocation7 + $0x70] sm:$0xff]
    %v1091 = vld [vmem:[#allocation7 + $0x78] sm:$0xff]
    %v1092 = vld [vmem:[#allocation8] sm:$0x1]
    %v1094 = vperm.slane %v1092, 0
    %1096 = vmatpush.msra.mxu0 %v1091
    %1097 = vmatpush.msra.mxu0 %v1090
    %1098 = vmatpush.msra.mxu0 %v1089
    %1099 = vmatpush.msra.mxu0 %v1088
    %1100 = vmatpush.msra.mxu0 %v1087
    %1101 = vmatpush.msra.mxu0 %v1086
    %1102 = vmatpush.msra.mxu0 %v1085
    %1103 = vmatpush.msra.mxu0 %v1084
    %1104 = vmatpush.msra.mxu0 %v1083
    %1105 = vmatpush.msra.mxu0 %v1082
    %1106 = vmatpush.msra.mxu0 %v1081
    %1107 = vmatpush.msra.mxu0 %v1080
    %1108 = vmatpush.msra.mxu0 %v1079
    %1109 = vmatpush.msra.mxu0 %v1078
    %1110 = vmatpush.msra.mxu0 %v1077
    %1111 = vmatpush.msra.mxu0 %v1076
    %1112 = vmatmul.f32.gmra.mxu0 %v1075
    %v1113 = vpop.f32.mrf.mxu0
    %v1114 = vadd.f32 %v1094, %v1113
    %1115 = vdwg.mxu0
    %1116 = vst [vmem:[#allocation10] sm:$0xff] %v1114
    // Predicated region
    $region38: #{mlp_single_forward.1} parent=1 // pred_check
      _
    $region39: #{mlp_single_forward.1} parent=1 // pred_check_branch
      %1118 = sbr.rel (0) target = $region41
    $region40: #{mlp_single_forward.1} parent=1 // pred_region
      %1120 = vsyncadd [#allocation4], 96
      %s1121 = sshll.u32 [#allocation10], 4
      %s1122 = int_to_ptr.vmem [resolvable:$true] %s1121
      %s1123 = sshll.u32 %s5, 4
      %s1124 = int_to_ptr.hbm [resolvable:$true] %s1123
      %1129 = dma.vmem_to_hbm [thread:$0]  %s1122, 32, %s1124, [#allocation4], 32, 32, 2
    $region41: #{mlp_single_forward.1} parent=1 // pred_fallthru
      _
    // Predicated region
    $region42: #{mlp_single_forward.1} parent=1 // pred_check
      _
    $region43: #{mlp_single_forward.1} parent=1 // pred_check_branch
      %1131 = sbr.rel (0) target = $region45
    $region44: #{mlp_single_forward.1} parent=1 // pred_region
      %1133 = dma.done [#allocation4], 128
    $region45: #{mlp_single_forward.1} parent=1 // pred_fallthru
      _
    %1134 = vsyncpa [#allocation3], 1
    %1135 = vsyncpa [#allocation6], 1
    %1136 = vsyncpa [#allocation9], 1
    %1137 = vsyncpa [#allocation4], 1

</llo_original>
